<compile_context>
chip_gen: v6e
topology: v6e:2x2x1
jax: 0.10.0
libtpu: 0.0.40
codegen_flags: <defaults>
</compile_context>

<pallas_src>
import jax
import jax.numpy as jnp
from jax.experimental import pallas as pl
from jax.experimental.pallas import tpu as pltpu

EPS = 1e-5  # nn.LayerNorm default


def prenorm_kernel(x_ref, gamma_ref, beta_ref, w_ref, b_ref, o_ref):
    # x_ref: (TM, D); gamma/beta: (1, D); w: (D, TN); b: (1, TN); o: (TM, TN).
    # LayerNorm reduces over the full D held in x_ref.
    x = x_ref[...].astype(jnp.float32)
    d = x.shape[-1]

    # Single-pass LayerNorm stats in f32 (biased variance, like nn.LayerNorm).
    sum_x = jnp.sum(x, axis=-1, keepdims=True)
    sum_x2 = jnp.sum(x * x, axis=-1, keepdims=True)
    mean = sum_x / d
    var = jnp.maximum(sum_x2 / d - mean * mean, 0.0)
    inv = jax.lax.rsqrt(var + EPS)
    normed = (x - mean) * inv * gamma_ref[...].astype(jnp.float32) \
             + beta_ref[...].astype(jnp.float32)

    # fn = Linear(dim, dim): feed the MXU in the weight dtype (bf16 weights ->
    # bf16 MXU path on v5e/v6e/v7x), accumulate in f32.
    y = jnp.dot(normed.astype(w_ref.dtype), w_ref[...],
                preferred_element_type=jnp.float32)
    o_ref[...] = (y + b_ref[...].astype(jnp.float32)).astype(o_ref.dtype)


def _round_up(a, b):
    return (a + b - 1) // b * b


def prenorm_linear(x, gamma, beta, w, b, *, tm=512, tn=None,
                   vmem_budget_bytes=None):
    """PreNorm with fn = Linear(dim, dim): fused LayerNorm + matmul on TPU.

    x: (B, N, D); gamma/beta: (1, D); w: (D, D) laid out (in, out); b: (1, D).
    """
    B, N, D = x.shape
    BN = B * N
    x2 = x.reshape(BN, D)

    x_item = jnp.dtype(x.dtype).itemsize
    w_item = jnp.dtype(w.dtype).itemsize

    # Generation-aware VMEM budget: ~half of physical VMEM per core.
    try:
        vmem_cap = int(pltpu.get_tpu_info().vmem_capacity_bytes)
    except Exception:  # no TPU visible at trace time; be conservative (v7x).
        vmem_cap = 64 * 1024 * 1024
    if vmem_budget_bytes is None:
        vmem_budget_bytes = vmem_cap // 2
    vmem_limit_bytes = int(min(vmem_budget_bytes + (16 << 20), vmem_cap))

    # --- Output-column tile --------------------------------------------------
    # Keep W fully resident & single-buffered when it comfortably fits;
    # otherwise split the output columns so the (double-buffered) W slab uses
    # at most ~1/3 of the budget.  On v7x (64 MiB/TC) this kicks in at roughly
    # half the D of v5e/v6e.
    w_budget = vmem_budget_bytes // 3
    if tn is None:
        if D <= 128 or D * D * w_item <= w_budget:
            tn = D
        else:
            tn = (w_budget // (2 * D * w_item)) // 128 * 128
            tn = int(min(max(tn, 128), D))
    split_cols = tn != D

    # --- Row tile -------------------------------------------------------------
    # Account for everything that scales with rows: the double-buffered x and
    # out tiles plus the in-kernel f32 intermediates (x_f32, normed, f32 acc).
    resident = (2 * D * tn * w_item) if split_cols else (D * D * w_item)
    resident += 2 * tn * w_item + 2 * D * 4 + tn * 4   # bias + gamma/beta (+f32 copies)
    per_row = 2 * D * x_item          # x tile, double-buffered
    per_row += 2 * tn * x_item        # out tile, double-buffered
    per_row += 3 * D * 4              # f32 intermediates inside the kernel
    avail = max(vmem_budget_bytes - resident, 0)
    max_tm_vmem = max(8, avail // max(per_row, 1))

    sublane = {4: 8, 2: 16, 1: 32}.get(x_item, 8)   # dtype sublane packing
    tm_eff = int(min(tm, _round_up(BN, sublane), max_tm_vmem))
    if tm_eff >= 256:
        tm_eff = tm_eff // 256 * 256   # match the 2x256x256 MXU on v6e/v7x
    elif tm_eff >= 128:
        tm_eff = 128
    else:
        tm_eff = max(sublane, tm_eff // sublane * sublane)

    grid = (pl.cdiv(BN, tm_eff), pl.cdiv(D, tn))

    # Constant-index operands -> single buffer (frees VMEM for bigger tiles).
    const = dict(pipeline_mode=pl.Buffered(1))
    w_kw = {} if split_cols else const     # W streams (2 buffers) when split
    b_kw = {} if split_cols else const

    # TODO(synk): on v7x, if profiling shows only one TensorCore active,
    # replace the "parallel" row axis with an explicit core split
    # (pltpu.CORE_PARALLEL leading axis or pl.core_map over a tensorcore mesh).
    out = pl.pallas_call(
        prenorm_kernel,
        out_shape=jax.ShapeDtypeStruct((BN, D), x.dtype),
        grid_spec=pltpu.PrefetchScalarGridSpec(
            num_scalar_prefetch=0,
            grid=grid,
            in_specs=[
                pl.BlockSpec((tm_eff, D), lambda i, j: (i, 0)),      # x rows
                pl.BlockSpec((1, D), lambda i, j: (0, 0), **const),  # gamma
                pl.BlockSpec((1, D), lambda i, j: (0, 0), **const),  # beta
                pl.BlockSpec((D, tn), lambda i, j: (0, j), **w_kw),  # W cols
                pl.BlockSpec((1, tn), lambda i, j: (0, j), **b_kw),  # bias
            ],
            out_specs=pl.BlockSpec((tm_eff, tn), lambda i, j: (i, j)),
        ),
        compiler_params=pltpu.CompilerParams(
            dimension_semantics=("parallel", "arbitrary"),
            vmem_limit_bytes=vmem_limit_bytes),
    )(x2, gamma, beta, w, b)
    return out.reshape(B, N, D)


if __name__ == "__main__":
    B, N, D = 2, 8, 32  # batch, num_tokens, dim (small demo shapes)

    key = jax.random.PRNGKey(0)
    kx, kw, kb = jax.random.split(key, 3)

    x = jax.random.normal(kx, (B, N, D), dtype=jnp.float32)

    # nn.LayerNorm(dim) params: gamma=1, beta=0 at init (reshaped to (1, D)).
    gamma = jnp.ones((1, D), dtype=jnp.float32)
    beta = jnp.zeros((1, D), dtype=jnp.float32)

    # fn = Linear(dim, dim): deterministic synthetic weights, (in, out) layout.
    w = jax.random.normal(kw, (D, D), dtype=jnp.float32) * 0.02
    b = jax.random.normal(kb, (1, D), dtype=jnp.float32) * 0.02

    y = prenorm_linear(x, gamma, beta, w, b)
    jax.block_until_ready(y)

    # Pure-JAX reference check.
    mean = jnp.mean(x, axis=-1, keepdims=True)
    var = jnp.mean((x - mean) ** 2, axis=-1, keepdims=True)
    normed = (x - mean) / jnp.sqrt(var + EPS) * gamma + beta
    ref = normed @ w + b
    assert jnp.allclose(y, ref, atol=1e-3, rtol=1e-3), "mismatch vs reference"

    print("KERNEL_OK")
</pallas_src>

<mosaic_0001>
module attributes {stable_mosaic.version = 11 : i64} {
  func.func @prenorm_kernel(%arg0: i32, %arg1: i32, %arg2: memref<16x32xf32, #tpu.memory_space<vmem>>, %arg3: memref<1x32xf32, #tpu.memory_space<vmem>>, %arg4: memref<1x32xf32, #tpu.memory_space<vmem>>, %arg5: memref<32x32xf32, #tpu.memory_space<vmem>>, %arg6: memref<1x32xf32, #tpu.memory_space<vmem>>, %arg7: memref<16x32xf32, #tpu.memory_space<vmem>>) attributes {dimension_semantics = [#tpu.dimension_semantics<parallel>, #tpu.dimension_semantics<arbitrary>], iteration_bounds = array<i64: 1, 1>, scalar_prefetch = 0 : i64, scratch_operands = 0 : i64, tpu.core_type = #tpu.core_type<tc>, window_params = [{transform_indices = @transform_0, window_bounds = array<i64: 16, 32>}, {pipeline_mode = #tpu.pipeline_mode<synchronous>, transform_indices = @transform_1, window_bounds = array<i64: 1, 32>}, {pipeline_mode = #tpu.pipeline_mode<synchronous>, transform_indices = @transform_2, window_bounds = array<i64: 1, 32>}, {pipeline_mode = #tpu.pipeline_mode<synchronous>, transform_indices = @transform_3, window_bounds = array<i64: 32, 32>}, {pipeline_mode = #tpu.pipeline_mode<synchronous>, transform_indices = @transform_4, window_bounds = array<i64: 1, 32>}, {transform_indices = @transform_5, window_bounds = array<i64: 16, 32>}]} {
    %c0 = arith.constant 0 : index
    %c0_0 = arith.constant 0 : index
    %0 = vector.load %arg2[%c0, %c0_0] : memref<16x32xf32, #tpu.memory_space<vmem>>, vector<16x32xf32>
    %cst = arith.constant dense<0.000000e+00> : vector<16xf32>
    %1 = vector.multi_reduction <add>, %0, %cst [1] : vector<16x32xf32> to vector<16xf32>
    %2 = vector.shape_cast %1 : vector<16xf32> to vector<16x1xf32>
    %3 = arith.mulf %0, %0 : vector<16x32xf32>
    %cst_1 = arith.constant dense<0.000000e+00> : vector<16xf32>
    %4 = vector.multi_reduction <add>, %3, %cst_1 [1] : vector<16x32xf32> to vector<16xf32>
    %5 = vector.shape_cast %4 : vector<16xf32> to vector<16x1xf32>
    %cst_2 = arith.constant 3.200000e+01 : f32
    %6 = vector.broadcast %cst_2 : f32 to vector<16x1xf32>
    %7 = arith.divf %2, %6 : vector<16x1xf32>
    %cst_3 = arith.constant 3.200000e+01 : f32
    %8 = vector.broadcast %cst_3 : f32 to vector<16x1xf32>
    %9 = arith.divf %5, %8 : vector<16x1xf32>
    %10 = arith.mulf %7, %7 : vector<16x1xf32>
    %11 = arith.subf %9, %10 : vector<16x1xf32>
    %cst_4 = arith.constant 0.000000e+00 : f32
    %12 = vector.broadcast %cst_4 : f32 to vector<16x1xf32>
    %13 = arith.maximumf %11, %12 : vector<16x1xf32>
    %cst_5 = arith.constant 9.99999974E-6 : f32
    %14 = vector.broadcast %cst_5 : f32 to vector<16x1xf32>
    %15 = arith.addf %13, %14 : vector<16x1xf32>
    %16 = math.rsqrt %15 : vector<16x1xf32>
    %17 = vector.broadcast %7 : vector<16x1xf32> to vector<16x32xf32>
    %18 = arith.subf %0, %17 : vector<16x32xf32>
    %19 = vector.broadcast %16 : vector<16x1xf32> to vector<16x32xf32>
    %20 = arith.mulf %18, %19 : vector<16x32xf32>
    %c0_6 = arith.constant 0 : index
    %c0_7 = arith.constant 0 : index
    %21 = vector.load %arg3[%c0_6, %c0_7] : memref<1x32xf32, #tpu.memory_space<vmem>>, vector<1x32xf32>
    %22 = vector.broadcast %21 : vector<1x32xf32> to vector<16x32xf32>
    %23 = arith.mulf %20, %22 : vector<16x32xf32>
    %c0_8 = arith.constant 0 : index
    %c0_9 = arith.constant 0 : index
    %24 = vector.load %arg4[%c0_8, %c0_9] : memref<1x32xf32, #tpu.memory_space<vmem>>, vector<1x32xf32>
    %25 = vector.broadcast %24 : vector<1x32xf32> to vector<16x32xf32>
    %26 = arith.addf %23, %25 : vector<16x32xf32>
    %c0_10 = arith.constant 0 : index
    %c0_11 = arith.constant 0 : index
    %27 = vector.load %arg5[%c0_10, %c0_11] : memref<32x32xf32, #tpu.memory_space<vmem>>, vector<32x32xf32>
    %cst_12 = arith.constant dense<0.000000e+00> : vector<16x32xf32>
    %28 = tpu.matmul %26, %27, %cst_12 {dimension_numbers = #tpu.dot_dimension_numbers<[1], [0], [0], [1], [0, 0, 1, 1], [], []>} : vector<16x32xf32>, vector<32x32xf32>, vector<16x32xf32> -> vector<16x32xf32>
    %c0_13 = arith.constant 0 : index
    %c0_14 = arith.constant 0 : index
    %29 = vector.load %arg6[%c0_13, %c0_14] : memref<1x32xf32, #tpu.memory_space<vmem>>, vector<1x32xf32>
    %30 = vector.broadcast %29 : vector<1x32xf32> to vector<16x32xf32>
    %31 = arith.addf %28, %30 : vector<16x32xf32>
    %c0_15 = arith.constant 0 : index
    %c0_16 = arith.constant 0 : index
    %32 = vector.load %arg7[%c0_15, %c0_16] : memref<16x32xf32, #tpu.memory_space<vmem>>, vector<16x32xf32>
    tpu.vector_store %arg7[%c0_15, %c0_16], %31 {strides = array<i32>} : memref<16x32xf32, #tpu.memory_space<vmem>>, vector<16x32xf32>,
    return
  }
  func.func @transform_0(%arg0: i32, %arg1: i32) -> (i32, i32) {
    %c0_i32 = arith.constant 0 : i32
    %c0_i32_0 = arith.constant 0 : i32
    return %arg0, %c0_i32 : i32, i32
  }
  func.func @transform_1(%arg0: i32, %arg1: i32) -> (i32, i32) {
    %c0_i32 = arith.constant 0 : i32
    %c0_i32_0 = arith.constant 0 : i32
    %c0_i32_1 = arith.constant 0 : i32
    return %c0_i32, %c0_i32_0 : i32, i32
  }
  func.func @transform_2(%arg0: i32, %arg1: i32) -> (i32, i32) {
    %c0_i32 = arith.constant 0 : i32
    %c0_i32_0 = arith.constant 0 : i32
    %c0_i32_1 = arith.constant 0 : i32
    return %c0_i32, %c0_i32_0 : i32, i32
  }
  func.func @transform_3(%arg0: i32, %arg1: i32) -> (i32, i32) {
    %c0_i32 = arith.constant 0 : i32
    %c0_i32_0 = arith.constant 0 : i32
    return %c0_i32, %arg1 : i32, i32
  }
  func.func @transform_4(%arg0: i32, %arg1: i32) -> (i32, i32) {
    %c0_i32 = arith.constant 0 : i32
    %c0_i32_0 = arith.constant 0 : i32
    return %c0_i32, %arg1 : i32, i32
  }
  func.func @transform_5(%arg0: i32, %arg1: i32) -> (i32, i32) {
    %c0_i32 = arith.constant 0 : i32
    return %arg0, %arg1 : i32, i32
  }
}

</mosaic_0001>

<llo_original>
// kernel: tpu_custom_call.1
$region0: #{tpu_custom_call.1}
  #allocation0 [shape = 'u32[]', space=smem, size = 0x4, offset = 0x4, fixed_abs, tag = 'smem constant byte address 0x4 - core index']
  #allocation1 [shape = 'u32[144,128]{1,0:T(1,128)}', space=vmem, size = 0x12000, scoped, tag = 'internal scratch']
  %s0 = inlined_call_operand.hbm [shape: f32[16,32], index: 0, kind: input, shape index: {}]
  %s1 = inlined_call_operand.vmem [shape: f32[1,32], index: 1, kind: input, shape index: {}]
  %s2 = inlined_call_operand.vmem [shape: f32[1,32], index: 2, kind: input, shape index: {}]
  %s3 = inlined_call_operand.hbm [shape: f32[32,32], index: 3, kind: input, shape index: {}]
  %s4 = inlined_call_operand.vmem [shape: f32[1,32], index: 4, kind: input, shape index: {}]
  %s5 = inlined_call_operand.hbm [shape: f32[16,32], index: 5, kind: output, shape index: {}]
  %s6 = sld [smem:[#allocation0]]
  $region38: #{tpu_custom_call.1} parent=0
    _
  %s8 = ssub.s32 1, %s6
  %s9 = scalar_select 0, %s8, %s6
  $region1: #{tpu_custom_call.1} parent=0
    #allocation2 [shape = 'u8[8192]{0}', space=vmem, size = 0x2000, scoped, tag = 'input window, operand 0, single buffered']
    #allocation3 [shape = 's32[1]{0}', space=sflag, size = 0x4, scoped, tag = 'scoped memory for tpu_custom_call.1']
    #allocation4 [shape = 's32[1]{0}', space=sflag, size = 0x4, scoped, tag = 'scoped memory for tpu_custom_call.1']
    #allocation5 [shape = 'u8[16384]{0}', space=vmem, size = 0x4000, scoped, tag = 'input window, operand 3, single buffered']
    #allocation6 [shape = 's32[1]{0}', space=sflag, size = 0x4, scoped, tag = 'scoped memory for tpu_custom_call.1']
    #allocation7 [shape = 'u8[8192]{0}', space=vmem, size = 0x2000, scoped, tag = 'output window, operand 0, single buffered']
    %10 = vsyncpa [#allocation3], 0
    %11 = vsyncpa [#allocation6], 0
    %12 = vsyncpa [#allocation4], 0
    // Predicated region
    $region2: #{tpu_custom_call.1} parent=1 // pred_check
      _
    $region3: #{tpu_custom_call.1} parent=1 // pred_check_branch
      %14 = sbr.rel (0) target = $region5
    $region4: #{tpu_custom_call.1} parent=1 // pred_region
      %s16 = ssub.s32 256, 256
      %17 = vsyncadd [#allocation3], %s16
      %s18 = sshll.u32 [#allocation2], 4
      %s19 = int_to_ptr.vmem [resolvable:$true] %s18
      %24 = dma.hbm_to_vmem [thread:$0]  %s0, 256, %s19, [#allocation3], 128, 128, 8
    $region5: #{tpu_custom_call.1} parent=1 // pred_fallthru
      _
    // Predicated region
    $region6: #{tpu_custom_call.1} parent=1 // pred_check
      _
    $region7: #{tpu_custom_call.1} parent=1 // pred_check_branch
      %26 = sbr.rel (0) target = $region9
    $region8: #{tpu_custom_call.1} parent=1 // pred_region
      _
    $region9: #{tpu_custom_call.1} parent=1 // pred_fallthru
      _
    // Predicated region
    $region10: #{tpu_custom_call.1} parent=1 // pred_check
      _
    $region11: #{tpu_custom_call.1} parent=1 // pred_check_branch
      %28 = sbr.rel (0) target = $region13
    $region12: #{tpu_custom_call.1} parent=1 // pred_region
      _
    $region13: #{tpu_custom_call.1} parent=1 // pred_fallthru
      _
    // Predicated region
    $region14: #{tpu_custom_call.1} parent=1 // pred_check
      _
    $region15: #{tpu_custom_call.1} parent=1 // pred_check_branch
      %30 = sbr.rel (0) target = $region17
    $region16: #{tpu_custom_call.1} parent=1 // pred_region
      %s32 = ssub.s32 512, 512
      %33 = vsyncadd [#allocation6], %s32
      %s34 = sshll.u32 [#allocation5], 4
      %s35 = int_to_ptr.vmem [resolvable:$true] %s34
      %40 = dma.hbm_to_vmem [thread:$0]  %s3, 512, %s35, [#allocation6], 128, 128, 8
    $region17: #{tpu_custom_call.1} parent=1 // pred_fallthru
      _
    // Predicated region
    $region18: #{tpu_custom_call.1} parent=1 // pred_check
      _
    $region19: #{tpu_custom_call.1} parent=1 // pred_check_branch
      %42 = sbr.rel (0) target = $region21
    $region20: #{tpu_custom_call.1} parent=1 // pred_region
      _
    $region21: #{tpu_custom_call.1} parent=1 // pred_fallthru
      _
    // Predicated region
    $region22: #{tpu_custom_call.1} parent=1 // pred_check
      _
    $region23: #{tpu_custom_call.1} parent=1 // pred_check_branch
      %44 = sbr.rel (0) target = $region25
    $region24: #{tpu_custom_call.1} parent=1 // pred_region
      %45 = dma.done [#allocation3], 256
    $region25: #{tpu_custom_call.1} parent=1 // pred_fallthru
      _
    // Predicated region
    $region26: #{tpu_custom_call.1} parent=1 // pred_check
      _
    $region27: #{tpu_custom_call.1} parent=1 // pred_check_branch
      %47 = sbr.rel (0) target = $region29
    $region28: #{tpu_custom_call.1} parent=1 // pred_region
      %48 = dma.done [#allocation6], 512
    $region29: #{tpu_custom_call.1} parent=1 // pred_fallthru
      _
    %v49 = vld [vmem:[#allocation2] sm:$0xff]
    %v50 = vld [vmem:[#allocation2 + $0x8] sm:$0xff]
    %vm51 = vcmask 261120
    %v52 = vsel %vm51, %v49, 0.0
    %53 = vadd.xlane.f32.xlu0 %v52
    %v54 = vpop.xlane.xlu0 %53
    %v55 = vsel %vm51, %v50, 0.0
    %56 = vadd.xlane.f32.xlu0 %v55
    %v57 = vpop.xlane.xlu0 %56
    %v58 = vmul.f32 %v49, %v49
    %v59 = vmul.f32 %v50, %v50
    %v60 = vsel %vm51, %v58, 0.0
    %61 = vadd.xlane.f32.xlu0 %v60
    %v62 = vpop.xlane.xlu0 %61
    %v63 = vsel %vm51, %v59, 0.0
    %64 = vadd.xlane.f32.xlu0 %v63
    %v65 = vpop.xlane.xlu0 %64
    %v66 = vrcp.pop 32.0
    %v67 = vmul.f32 %v54, %v66
    %v68 = vmul.f32 %v57, %v66
    %v69 = vmul.f32 %v62, %v66
    %v70 = vmul.f32 %v65, %v66
    %v71 = vmul.f32 %v67, %v67
    %v72 = vmul.f32 %v68, %v68
    %v73 = vsub.f32 %v69, %v71
    %v74 = vsub.f32 %v70, %v72
    %v75 = vmax.f32 %v73, 0.0
    %v76 = vmax.f32 %v74, 0.0
    %v77 = vadd.f32 %v75, 1e-05
    %v78 = vadd.f32 %v76, 1e-05
    %v79 = vrsqrt.pop %v77
    %v80 = vrsqrt.pop %v78
    %v81 = vsub.f32 %v49, %v67
    %v82 = vsub.f32 %v50, %v68
    %v83 = vmul.f32 %v81, %v79
    %v84 = vmul.f32 %v82, %v80
    %v85 = vld [vmem:[%s1] sm:$0x1]
    %v87 = vlaneseq
    %v88 = vshrl.u32 %v87, 7
    %v89 = vsub.s32 0, %v88
    %v90 = vrot.slane %v85, %v89
    %v92 = vmul.f32 %v83, %v90
    %v93 = vmul.f32 %v84, %v90
    %v94 = vld [vmem:[%s2] sm:$0x1]
    %v96 = vlaneseq
    %v97 = vshrl.u32 %v96, 7
    %v98 = vsub.s32 0, %v97
    %v99 = vrot.slane %v94, %v98
    %v101 = vadd.f32 %v92, %v99
    %v102 = vadd.f32 %v93, %v99
    %v103 = vld [vmem:[#allocation5] sm:$0xff]
    %v104 = vld [vmem:[#allocation5 + $0x8] sm:$0xff]
    %v105 = vld [vmem:[#allocation5 + $0x10] sm:$0xff]
    %v106 = vld [vmem:[#allocation5 + $0x18] sm:$0xff]
    %v107 = vld [vmem:[%s4] sm:$0x1]
    %v109 = vlaneseq
    %v110 = vshrl.u32 %v109, 7
    %v111 = vsub.s32 0, %v110
    %v112 = vrot.slane %v107, %v111
    %v115 = vsel %vm51, %v101, 0
    %v118 = vsel %vm51, %v102, 0
    %120 = vmatprep.subr.mxu0 0.0
    %121 = vmatpush1.msra.mxu0 0.0
    %122 = vmatprep.subr.mxu0 0.0
    %123 = vmatpush1.msra.mxu0 0.0
    %124 = vmatprep.subr.mxu0 0.0
    %125 = vmatpush1.msra.mxu0 0.0
    %126 = vmatprep.subr.mxu0 0.0
    %127 = vmatpush1.msra.mxu0 0.0
    %128 = vmatprep.subr.mxu0 0.0
    %129 = vmatpush1.msra.mxu0 0.0
    %130 = vmatprep.subr.mxu0 0.0
    %131 = vmatpush1.msra.mxu0 0.0
    %132 = vmatprep.subr.mxu0 0.0
    %133 = vmatpush1.msra.mxu0 0.0
    %134 = vmatprep.subr.mxu0 0.0
    %135 = vmatpush1.msra.mxu0 0.0
    %136 = vmatprep.subr.mxu0 0.0
    %137 = vmatpush1.msra.mxu0 0.0
    %138 = vmatprep.subr.mxu0 0.0
    %139 = vmatpush1.msra.mxu0 0.0
    %140 = vmatprep.subr.mxu0 0.0
    %141 = vmatpush1.msra.mxu0 0.0
    %142 = vmatprep.subr.mxu0 0.0
    %143 = vmatpush1.msra.mxu0 0.0
    %144 = vmatprep.subr.mxu0 0.0
    %145 = vmatpush1.msra.mxu0 %v106
    %146 = vmatprep.subr.mxu0 0.0
    %147 = vmatpush1.msra.mxu0 %v105
    %148 = vmatprep.subr.mxu0 0.0
    %149 = vmatpush1.msra.mxu0 %v104
    %150 = vmatprep.subr.mxu0 0.0
    %151 = vmatpush1.msra.mxu0 %v103
    %152 = vmatprep.subr.mxu0 0.0
    %153 = vmatpush2.msra.mxu0 0.0
    %154 = vmatprep.subr.mxu0 0.0
    %155 = vmatpush2.msra.mxu0 0.0
    %156 = vmatprep.subr.mxu0 0.0
    %157 = vmatpush2.msra.mxu0 0.0
    %158 = vmatprep.subr.mxu0 0.0
    %159 = vmatpush2.msra.mxu0 0.0
    %160 = vmatprep.subr.mxu0 0.0
    %161 = vmatpush2.msra.mxu0 0.0
    %162 = vmatprep.subr.mxu0 0.0
    %163 = vmatpush2.msra.mxu0 0.0
    %164 = vmatprep.subr.mxu0 0.0
    %165 = vmatpush2.msra.mxu0 0.0
    %166 = vmatprep.subr.mxu0 0.0
    %167 = vmatpush2.msra.mxu0 0.0
    %168 = vmatprep.subr.mxu0 0.0
    %169 = vmatpush2.msra.mxu0 0.0
    %170 = vmatprep.subr.mxu0 0.0
    %171 = vmatpush2.msra.mxu0 0.0
    %172 = vmatprep.subr.mxu0 0.0
    %173 = vmatpush2.msra.mxu0 0.0
    %174 = vmatprep.subr.mxu0 0.0
    %175 = vmatpush2.msra.mxu0 0.0
    %176 = vmatprep.subr.mxu0 0.0
    %177 = vmatpush2.msra.mxu0 0.0
    %178 = vmatprep.subr.mxu0 0.0
    %179 = vmatpush2.msra.mxu0 0.0
    %180 = vmatprep.subr.mxu0 0.0
    %181 = vmatpush2.msra.mxu0 0.0
    %182 = vmatprep.subr.mxu0 0.0
    %183 = vmatpush2.msra.mxu0 0.0
    %184 = vmatprep.mubr.f32.mxu0 0.0
    %185 = vmatmul.mubr.f32.gmra.mxu0 %v115
    %v186 = vpop.f32.mrf.mxu0
    %v187 = vadd.f32 %v112, %v186
    %v188 = vpop.f32.mrf.mxu0
    %189 = vmatprep.mubr.f32.mxu0 0.0
    %190 = vmatmul.mubr.f32.gmra.mxu0 %v118
    %v191 = vpop.f32.mrf.mxu0
    %v192 = vadd.f32 %v112, %v191
    %v193 = vpop.f32.mrf.mxu0
    %194 = vdwg.mxu0
    %195 = vst.msk [vmem:[#allocation7] sm:$0xff] %vm51, %v187
    %196 = vst.msk [vmem:[#allocation7 + $0x8] sm:$0xff] %vm51, %v192
    // Predicated region
    $region30: #{tpu_custom_call.1} parent=1 // pred_check
      _
    $region31: #{tpu_custom_call.1} parent=1 // pred_check_branch
      %198 = sbr.rel (0) target = $region33
    $region32: #{tpu_custom_call.1} parent=1 // pred_region
      %s200 = ssub.s32 256, 256
      %201 = vsyncadd [#allocation4], %s200
      %s202 = sshll.u32 [#allocation7], 4
      %s203 = int_to_ptr.vmem [resolvable:$true] %s202
      %208 = dma.vmem_to_hbm [thread:$0]  %s203, 256, %s5, [#allocation4], 128, 128, 8
    $region33: #{tpu_custom_call.1} parent=1 // pred_fallthru
      _
    // Predicated region
    $region34: #{tpu_custom_call.1} parent=1 // pred_check
      _
    $region35: #{tpu_custom_call.1} parent=1 // pred_check_branch
      %210 = sbr.rel (0) target = $region37
    $region36: #{tpu_custom_call.1} parent=1 // pred_region
      %211 = dma.done [#allocation4], 256
    $region37: #{tpu_custom_call.1} parent=1 // pred_fallthru
      _
    %212 = vsyncpa [#allocation3], 1
    %213 = vsyncpa [#allocation6], 1
    %214 = vsyncpa [#allocation4], 1

</llo_original>
